<compile_context>
chip_gen: v7x
topology: tpu7x:2x2x1
jax: 0.10.0
libtpu: 0.0.40
codegen_flags: <defaults>
</compile_context>

<pallas_src>
import math

import jax
import jax.numpy as jnp
from jax.experimental import pallas as pl
from jax.experimental.pallas import tpu as pltpu


def _generator_kernel(z_ref, w1_ref, b1_ref, w2_ref, b2_ref, o_ref):
    # z_ref:  (TM, D1)   row tile of the (possibly row-folded) flattened input
    # w1_ref: (D1, D1)   first Linear weight (input-major: x @ W1)
    # b1_ref: (1,  D1)
    # w2_ref: (D1, TN)   column tile of the second Linear weight
    # b2_ref: (1,  TN)
    # o_ref:  (TM, TN)
    x = z_ref[...]
    if x.dtype != w1_ref.dtype:           # static (trace-time) branch
        x = x.astype(w1_ref.dtype)
    h = jnp.dot(x, w1_ref[...], preferred_element_type=jnp.float32)
    h = h + b1_ref[...].astype(jnp.float32)
    # LeakyReLU (torch default negative_slope = 0.01), computed in f32 on the VPU.
    h = jnp.where(h > 0, h, jnp.float32(0.01) * h)
    # TODO(synk): Dropout is identity here (inference / eval mode); training-mode
    # stochastic dropout would use pltpu.prng_seed + pltpu.prng_random_bits.
    y = jnp.dot(h.astype(w2_ref.dtype), w2_ref[...],
                preferred_element_type=jnp.float32)
    y = jnp.tanh(y + b2_ref[...].astype(jnp.float32))
    # TODO(synk): if bundle dumps show the single EUP binding on v6e/v7x (one tanh per
    # output element), replace jnp.tanh with a VPU polynomial (VALU slots are idle here).
    o_ref[...] = y.astype(o_ref.dtype)


def prepare_generator_params(w1, b1, w2, b2, emb_dim, *, param_dtype=jnp.bfloat16):
    """One-time weight preprocessing (kept OFF the per-call hot path).

    * Casts weights/biases to `param_dtype` (bf16 is the production default; the kernel
      always accumulates and does elementwise math in f32).
    * If emb_dim is not a multiple of 128, precomputes lane-dense block-diagonal weights
      ("fold" consecutive rows) so the kernel writes full 128-lane rows (unmasked vst).
      Raw (unfolded) weights are kept for row counts not divisible by the fold.
    """
    d8 = emb_dim // 8
    assert w1.shape == (d8, d8) and w2.shape == (d8, emb_dim)
    if param_dtype is not None:
        w1, b1, w2, b2 = (a.astype(param_dtype) for a in (w1, b1, w2, b2))
    b1 = b1.reshape(1, d8)
    b2 = b2.reshape(1, emb_dim)
    params = dict(emb_dim=emb_dim, fold=1,
                  w1=w1, b1=b1, w2=w2, b2=b2,
                  w1_raw=w1, b1_raw=b1, w2_raw=w2, b2_raw=b2)
    if emb_dim % 128 != 0:
        fold = 128 // math.gcd(emb_dim, 128)       # minimal fold for 128-lane rows
        eye1 = jnp.eye(fold, dtype=w1.dtype)
        eye2 = jnp.eye(fold, dtype=w2.dtype)
        params.update(
            fold=fold,
            w1=jnp.kron(eye1, w1),                 # (fold*d8, fold*d8) block-diagonal
            b1=jnp.tile(b1, (1, fold)),
            w2=jnp.kron(eye2, w2),                 # (fold*d8, fold*emb) block-diagonal
            b2=jnp.tile(b2, (1, fold)),
        )
    # Materialize now so kron/tile never runs on the forward hot path.
    for k in ("w1", "b1", "w2", "b2", "w1_raw", "b1_raw", "w2_raw", "b2_raw"):
        jax.block_until_ready(params[k])
    return params


def _vmem_budget_bytes():
    """Per-core VMEM budget with compiler-scratch headroom (~52 MiB v7x, ~105 MiB v5e/v6e)."""
    try:
        phys = int(pltpu.get_tpu_info().vmem_capacity_bytes)
    except Exception:
        phys = 64 * 1024 * 1024                    # conservative: v7x per-core VMEM
    return int(phys * 0.82)


def _pick_tm(mk, cap):
    """Row tile: multiple of 8 (sublane rule), as large as `cap` allows, but split so the
    'parallel' M axis has >= 2 blocks when possible (keeps both v7x TensorCores busy)."""
    if mk <= 8:
        return mk                                  # single full-extent block; nothing to split
    cap = max(8, min(cap, mk))
    if cap >= mk:                                  # would collapse to a single grid block
        half = -(-mk // 2)                         # ceil(mk / 2)
        tm = -(-half // 8) * 8                     # round up -> exactly 2 blocks
    else:
        tm = (cap // 8) * 8
    if tm >= 512:
        tm = (tm // 256) * 256                     # keep the MXU M dimension full on big tiles
    return max(8, tm)


def generator_forward(z, params, bs, *, tile_m=1024, tn_max=4096, out_dtype=None):
    """z: (bs, n, emb_dim//8) -> (bs, n, emb_dim), using prepared `params`."""
    emb_dim = params["emb_dim"]
    d8 = emb_dim // 8
    out_dtype = z.dtype if out_dtype is None else out_dtype
    z2d = z.reshape(-1, d8)                        # same as torch .view (row-major)
    m = z2d.shape[0]

    # ---- lane-dense fold (weights already precomputed in prepare_generator_params) ---
    fold = params["fold"]
    if fold > 1 and m % fold == 0:
        w1, b1, w2, b2 = params["w1"], params["b1"], params["w2"], params["b2"]
        z2d = z2d.reshape(m // fold, fold * d8)    # free row-major reshape
    else:
        fold = 1
        w1, b1, w2, b2 = (params["w1_raw"], params["b1_raw"],
                          params["w2_raw"], params["b2_raw"])

    mk, d8k = z2d.shape
    embk = fold * emb_dim

    # ---- N (output-column) tile: bounds W2 residency, gives a 2nd parallel axis -------
    if embk % 128 != 0:
        tn = embk                                  # lane rule: full extent
    else:
        tn = min(embk, max(128, (tn_max // 128) * 128))
    grid_n = pl.cdiv(embk, tn)

    # ---- VMEM accounting (incl. f32 intermediates) and row tile ----------------------
    in_s = jnp.dtype(z2d.dtype).itemsize
    w1_s = jnp.dtype(w1.dtype).itemsize
    w2_s = jnp.dtype(w2.dtype).itemsize
    out_s = jnp.dtype(out_dtype).itemsize

    w2_bufs = 1 if grid_n == 1 else 2              # constant index_map -> single buffer
    fixed_bytes = ((d8k * d8k + d8k) * w1_s        # W1 + b1 (single-buffered)
                   + (d8k * tn + tn) * w2_s * w2_bufs)
    per_row_bytes = (2 * d8k * in_s                # z tile (double-buffered)
                     + 2 * tn * out_s              # out tile (double-buffered)
                     + 4 * d8k + 4 * tn)           # f32 intermediates: h and pre-cast y

    budget = _vmem_budget_bytes()
    tm_cap = max(8, (budget - fixed_bytes) // per_row_bytes)
    tm = _pick_tm(mk, min(int(tile_m), int(tm_cap)))
    grid_m = pl.cdiv(mk, tm)

    vmem_need = fixed_bytes + tm * per_row_bytes
    vmem_limit = int(max(16 * 1024 * 1024, min(budget, vmem_need + (8 << 20))))

    w2_reads = 1 if grid_n == 1 else grid_m
    cost = pl.CostEstimate(
        flops=2 * mk * d8k * d8k * grid_n + 2 * mk * d8k * embk,
        transcendentals=mk * embk,                 # tanh
        bytes_accessed=(mk * d8k * in_s + mk * embk * out_s
                        + (d8k * d8k + d8k) * w1_s
                        + (d8k * embk + embk) * w2_s * w2_reads),
    )

    def _run(weight_mode):
        # weight_mode: pipeline_mode for constant-index weight/bias blocks, or None.
        kw = {} if weight_mode is None else {"pipeline_mode": weight_mode}
        kw2 = kw if grid_n == 1 else {}            # W2/b2 only constant when grid_n == 1
        in_specs = [
            pl.BlockSpec((tm, d8k), lambda i, j: (i, 0)),           # z row tile
            pl.BlockSpec((d8k, d8k), lambda i, j: (0, 0), **kw),    # W1 (constant block)
            pl.BlockSpec((1, d8k), lambda i, j: (0, 0), **kw),      # b1
            pl.BlockSpec((d8k, tn), lambda i, j: (0, j), **kw2),    # W2 column tile
            pl.BlockSpec((1, tn), lambda i, j: (0, j), **kw2),      # b2 column tile
        ]
        return pl.pallas_call(
            _generator_kernel,
            out_shape=jax.ShapeDtypeStruct((mk, embk), out_dtype),
            grid_spec=pltpu.PrefetchScalarGridSpec(
                num_scalar_prefetch=0,
                grid=(grid_m, grid_n),                               # N innermost
                in_specs=in_specs,
                out_specs=pl.BlockSpec((tm, tn), lambda i, j: (i, j)),
            ),
            compiler_params=pltpu.CompilerParams(
                dimension_semantics=("parallel", "parallel"),        # both axes independent
                vmem_limit_bytes=vmem_limit,
            ),
            cost_estimate=cost,
        )(z2d, w1, b1, w2, b2)

    try:
        # Single-buffer the constant weight/bias blocks (their index_map is constant,
        # so a second pipeline buffer is pure VMEM waste).
        out2d = _run(pl.Buffered(1))
    except Exception:
        # Fallback for JAX builds that reject Buffered(1) / pipeline_mode.
        out2d = _run(None)

    # Unfold is a free row-major reshape back to (bs, n, emb_dim).
    return out2d.reshape(bs, -1, emb_dim)


def _init_linear(key, fan_in, fan_out):
    # PyTorch nn.Linear default init: U(-1/sqrt(fan_in), 1/sqrt(fan_in)).
    kw, kb = jax.random.split(key)
    bound = 1.0 / jnp.sqrt(jnp.float32(fan_in))
    # Stored as (fan_in, fan_out) so the kernel computes x @ W.
    w = jax.random.uniform(kw, (fan_in, fan_out), jnp.float32, -bound, bound)
    b = jax.random.uniform(kb, (1, fan_out), jnp.float32, -bound, bound)
    return w, b


def _reference(z, w1, b1, w2, b2, bs, emb_dim):
    d8 = emb_dim // 8
    x = z.reshape(-1, d8).astype(jnp.float32)
    hp = jax.lax.Precision.HIGHEST
    h = jnp.dot(x, w1, precision=hp) + b1
    h = jnp.where(h > 0, h, 0.01 * h)
    y = jnp.tanh(jnp.dot(h, w2, precision=hp) + b2)
    return y.reshape(bs, -1, emb_dim)


if __name__ == "__main__":
    key = jax.random.PRNGKey(0)

    # --- Config A: original small config (emb_dim=32 -> d8=4).
    #     Exercises the lane-dense fold path (fold=4 -> kernel writes 128-wide rows).
    bs, n, emb_dim = 2, 8, 32
    d8 = emb_dim // 8
    kz, k1, k2, key = jax.random.split(key, 4)
    z = jax.random.normal(kz, (bs, n, d8), jnp.float32)
    w1, b1 = _init_linear(k1, d8, d8)
    w2, b2 = _init_linear(k2, d8, emb_dim)
    params_f32 = prepare_generator_params(w1, b1, w2, b2, emb_dim,
                                          param_dtype=jnp.float32)
    out = jax.block_until_ready(generator_forward(z, params_f32, bs))
    ref = _reference(z, w1, b1, w2, b2, bs, emb_dim)
    assert out.shape == (bs, n, emb_dim)
    assert jnp.allclose(out, ref, atol=1e-4, rtol=1e-4), "config A mismatch"

    # --- Config B: emb_dim multiple of 128 (fold=1), rows not divisible by the row tile
    #     (masked tail block, grid_m>=2) and tn_max=128 to exercise the tiled-W2 N axis.
    bs2, n2, emb2 = 2, 100, 256
    d8b = emb2 // 8
    kz, k1, k2, key = jax.random.split(key, 4)
    zb = jax.random.normal(kz, (bs2, n2, d8b), jnp.float32)
    w1b, b1b = _init_linear(k1, d8b, d8b)
    w2b, b2b = _init_linear(k2, d8b, emb2)
    params_b = prepare_generator_params(w1b, b1b, w2b, b2b, emb2,
                                        param_dtype=jnp.float32)
    outb = jax.block_until_ready(
        generator_forward(zb, params_b, bs2, tile_m=64, tn_max=128))
    refb = _reference(zb, w1b, b1b, w2b, b2b, bs2, emb2)
    assert outb.shape == (bs2, n2, emb2)
    assert jnp.allclose(outb, refb, atol=1e-4, rtol=1e-4), "config B mismatch"

    # --- Config C: production default — bf16 params (prepare default), bf16 activations
    #     and output, f32 accumulation + f32 elementwise inside the kernel.
    bf = jnp.bfloat16
    params_bf16 = prepare_generator_params(w1, b1, w2, b2, emb_dim)   # bf16 default
    outc = jax.block_until_ready(generator_forward(z.astype(bf), params_bf16, bs))
    assert outc.shape == (bs, n, emb_dim)
    assert outc.dtype == bf
    assert jnp.allclose(outc.astype(jnp.float32), ref, atol=5e-2, rtol=5e-2), \
        "config C (bf16) mismatch"

    print("KERNEL_OK")
</pallas_src>

<mosaic_0001>
module attributes {stable_mosaic.version = 11 : i64} {
  func.func @_generator_kernel(%arg0: i32, %arg1: i32, %arg2: memref<4x16xf32, #tpu.memory_space<vmem>>, %arg3: memref<16x16xf32, #tpu.memory_space<vmem>>, %arg4: memref<1x16xf32, #tpu.memory_space<vmem>>, %arg5: memref<16x128xf32, #tpu.memory_space<vmem>>, %arg6: memref<1x128xf32, #tpu.memory_space<vmem>>, %arg7: memref<4x128xf32, #tpu.memory_space<vmem>>) attributes {dimension_semantics = [#tpu.dimension_semantics<parallel>, #tpu.dimension_semantics<parallel>], iteration_bounds = array<i64: 1, 1>, scalar_prefetch = 0 : i64, scratch_operands = 0 : i64, tpu.core_type = #tpu.core_type<tc>, window_params = [{transform_indices = @transform_0, window_bounds = array<i64: 4, 16>}, {pipeline_mode = #tpu.pipeline_mode<synchronous>, transform_indices = @transform_1, window_bounds = array<i64: 16, 16>}, {pipeline_mode = #tpu.pipeline_mode<synchronous>, transform_indices = @transform_2, window_bounds = array<i64: 1, 16>}, {pipeline_mode = #tpu.pipeline_mode<synchronous>, transform_indices = @transform_3, window_bounds = array<i64: 16, 128>}, {pipeline_mode = #tpu.pipeline_mode<synchronous>, transform_indices = @transform_4, window_bounds = array<i64: 1, 128>}, {transform_indices = @transform_5, window_bounds = array<i64: 4, 128>}]} {
    %c0 = arith.constant 0 : index
    %c0_0 = arith.constant 0 : index
    %0 = vector.load %arg2[%c0, %c0_0] : memref<4x16xf32, #tpu.memory_space<vmem>>, vector<4x16xf32>
    %c0_1 = arith.constant 0 : index
    %c0_2 = arith.constant 0 : index
    %1 = vector.load %arg3[%c0_1, %c0_2] : memref<16x16xf32, #tpu.memory_space<vmem>>, vector<16x16xf32>
    %cst = arith.constant dense<0.000000e+00> : vector<4x16xf32>
    %2 = tpu.matmul %0, %1, %cst {dimension_numbers = #tpu.dot_dimension_numbers<[1], [0], [0], [1], [0, 0, 1, 1], [], []>} : vector<4x16xf32>, vector<16x16xf32>, vector<4x16xf32> -> vector<4x16xf32>
    %c0_3 = arith.constant 0 : index
    %c0_4 = arith.constant 0 : index
    %3 = vector.load %arg4[%c0_3, %c0_4] : memref<1x16xf32, #tpu.memory_space<vmem>>, vector<1x16xf32>
    %4 = vector.broadcast %3 : vector<1x16xf32> to vector<4x16xf32>
    %5 = arith.addf %2, %4 : vector<4x16xf32>
    %cst_5 = arith.constant 0.000000e+00 : f32
    %6 = vector.broadcast %cst_5 : f32 to vector<4x16xf32>
    %7 = arith.cmpf ogt, %5, %6 : vector<4x16xf32>
    %cst_6 = arith.constant 0.00999999977 : f32
    %8 = vector.broadcast %cst_6 : f32 to vector<4x16xf32>
    %9 = arith.mulf %8, %5 : vector<4x16xf32>
    %10 = arith.select %7, %5, %9 : vector<4x16xi1>, vector<4x16xf32>
    %c0_7 = arith.constant 0 : index
    %c0_8 = arith.constant 0 : index
    %11 = vector.load %arg5[%c0_7, %c0_8] : memref<16x128xf32, #tpu.memory_space<vmem>>, vector<16x128xf32>
    %cst_9 = arith.constant dense<0.000000e+00> : vector<4x128xf32>
    %12 = tpu.matmul %10, %11, %cst_9 {dimension_numbers = #tpu.dot_dimension_numbers<[1], [0], [0], [1], [0, 0, 1, 1], [], []>} : vector<4x16xf32>, vector<16x128xf32>, vector<4x128xf32> -> vector<4x128xf32>
    %c0_10 = arith.constant 0 : index
    %c0_11 = arith.constant 0 : index
    %13 = vector.load %arg6[%c0_10, %c0_11] : memref<1x128xf32, #tpu.memory_space<vmem>>, vector<1x128xf32>
    %14 = vector.broadcast %13 : vector<1x128xf32> to vector<4x128xf32>
    %15 = arith.addf %12, %14 : vector<4x128xf32>
    %16 = math.tanh %15 : vector<4x128xf32>
    %c0_12 = arith.constant 0 : index
    %c0_13 = arith.constant 0 : index
    %17 = vector.load %arg7[%c0_12, %c0_13] : memref<4x128xf32, #tpu.memory_space<vmem>>, vector<4x128xf32>
    tpu.vector_store %arg7[%c0_12, %c0_13], %16 {strides = array<i32>} : memref<4x128xf32, #tpu.memory_space<vmem>>, vector<4x128xf32>,
    return
  }
  func.func @transform_0(%arg0: i32, %arg1: i32) -> (i32, i32) {
    %c0_i32 = arith.constant 0 : i32
    %c0_i32_0 = arith.constant 0 : i32
    return %arg0, %c0_i32 : i32, i32
  }
  func.func @transform_1(%arg0: i32, %arg1: i32) -> (i32, i32) {
    %c0_i32 = arith.constant 0 : i32
    %c0_i32_0 = arith.constant 0 : i32
    %c0_i32_1 = arith.constant 0 : i32
    return %c0_i32, %c0_i32_0 : i32, i32
  }
  func.func @transform_2(%arg0: i32, %arg1: i32) -> (i32, i32) {
    %c0_i32 = arith.constant 0 : i32
    %c0_i32_0 = arith.constant 0 : i32
    %c0_i32_1 = arith.constant 0 : i32
    return %c0_i32, %c0_i32_0 : i32, i32
  }
  func.func @transform_3(%arg0: i32, %arg1: i32) -> (i32, i32) {
    %c0_i32 = arith.constant 0 : i32
    %c0_i32_0 = arith.constant 0 : i32
    return %c0_i32, %arg1 : i32, i32
  }
  func.func @transform_4(%arg0: i32, %arg1: i32) -> (i32, i32) {
    %c0_i32 = arith.constant 0 : i32
    %c0_i32_0 = arith.constant 0 : i32
    return %c0_i32, %arg1 : i32, i32
  }
  func.func @transform_5(%arg0: i32, %arg1: i32) -> (i32, i32) {
    %c0_i32 = arith.constant 0 : i32
    return %arg0, %arg1 : i32, i32
  }
}

module attributes {stable_mosaic.version = 11 : i64} {
  func.func @_generator_kernel(%arg0: i32, %arg1: i32, %arg2: memref<4x16xf32, #tpu.memory_space<vmem>>, %arg3: memref<16x16xf32, #tpu.memory_space<vmem>>, %arg4: memref<1x16xf32, #tpu.memory_space<vmem>>, %arg5: memref<16x128xf32, #tpu.memory_space<vmem>>, %arg6: memref<1x128xf32, #tpu.memory_space<vmem>>, %arg7: memref<4x128xf32, #tpu.memory_space<vmem>>) attributes {dimension_semantics = [#tpu.dimension_semantics<parallel>, #tpu.dimension_semantics<parallel>], iteration_bounds = array<i64: 1, 1>, scalar_prefetch = 0 : i64, scratch_operands = 0 : i64, tpu.core_type = #tpu.core_type<tc>, window_params = [{transform_indices = @transform_0, window_bounds = array<i64: 4, 16>}, {pipeline_mode = #tpu.pipeline_mode<synchronous>, transform_indices = @transform_1, window_bounds = array<i64: 16, 16>}, {pipeline_mode = #tpu.pipeline_mode<synchronous>, transform_indices = @transform_2, window_bounds = array<i64: 1, 16>}, {transform_indices = @transform_3, window_bounds = array<i64: 16, 128>}, {transform_indices = @transform_4, window_bounds = array<i64: 1, 128>}, {transform_indices = @transform_5, window_bounds = array<i64: 4, 128>}]} {
    %c0 = arith.constant 0 : index
    %c0_0 = arith.constant 0 : index
    %0 = vector.load %arg2[%c0, %c0_0] : memref<4x16xf32, #tpu.memory_space<vmem>>, vector<4x16xf32>
    %c0_1 = arith.constant 0 : index
    %c0_2 = arith.constant 0 : index
    %1 = vector.load %arg3[%c0_1, %c0_2] : memref<16x16xf32, #tpu.memory_space<vmem>>, vector<16x16xf32>
    %cst = arith.constant dense<0.000000e+00> : vector<4x16xf32>
    %2 = tpu.matmul %0, %1, %cst {dimension_numbers = #tpu.dot_dimension_numbers<[1], [0], [0], [1], [0, 0, 1, 1], [], []>} : vector<4x16xf32>, vector<16x16xf32>, vector<4x16xf32> -> vector<4x16xf32>
    %c0_3 = arith.constant 0 : index
    %c0_4 = arith.constant 0 : index
    %3 = vector.load %arg4[%c0_3, %c0_4] : memref<1x16xf32, #tpu.memory_space<vmem>>, vector<1x16xf32>
    %4 = vector.broadcast %3 : vector<1x16xf32> to vector<4x16xf32>
    %5 = arith.addf %2, %4 : vector<4x16xf32>
    %cst_5 = arith.constant 0.000000e+00 : f32
    %6 = vector.broadcast %cst_5 : f32 to vector<4x16xf32>
    %7 = arith.cmpf ogt, %5, %6 : vector<4x16xf32>
    %cst_6 = arith.constant 0.00999999977 : f32
    %8 = vector.broadcast %cst_6 : f32 to vector<4x16xf32>
    %9 = arith.mulf %8, %5 : vector<4x16xf32>
    %10 = arith.select %7, %5, %9 : vector<4x16xi1>, vector<4x16xf32>
    %c0_7 = arith.constant 0 : index
    %c0_8 = arith.constant 0 : index
    %11 = vector.load %arg5[%c0_7, %c0_8] : memref<16x128xf32, #tpu.memory_space<vmem>>, vector<16x128xf32>
    %cst_9 = arith.constant dense<0.000000e+00> : vector<4x128xf32>
    %12 = tpu.matmul %10, %11, %cst_9 {dimension_numbers = #tpu.dot_dimension_numbers<[1], [0], [0], [1], [0, 0, 1, 1], [], []>} : vector<4x16xf32>, vector<16x128xf32>, vector<4x128xf32> -> vector<4x128xf32>
    %c0_10 = arith.constant 0 : index
    %c0_11 = arith.constant 0 : index
    %13 = vector.load %arg6[%c0_10, %c0_11] : memref<1x128xf32, #tpu.memory_space<vmem>>, vector<1x128xf32>
    %14 = vector.broadcast %13 : vector<1x128xf32> to vector<4x128xf32>
    %15 = arith.addf %12, %14 : vector<4x128xf32>
    %16 = math.tanh %15 : vector<4x128xf32>
    %c0_12 = arith.constant 0 : index
    %c0_13 = arith.constant 0 : index
    %17 = vector.load %arg7[%c0_12, %c0_13] : memref<4x128xf32, #tpu.memory_space<vmem>>, vector<4x128xf32>
    tpu.vector_store %arg7[%c0_12, %c0_13], %16 {strides = array<i32>} : memref<4x128xf32, #tpu.memory_space<vmem>>, vector<4x128xf32>,
    return
  }
  func.func @transform_0(%arg0: i32, %arg1: i32) -> (i32, i32) {
    %c0_i32 = arith.constant 0 : i32
    %c0_i32_0 = arith.constant 0 : i32
    return %arg0, %c0_i32 : i32, i32
  }
  func.func @transform_1(%arg0: i32, %arg1: i32) -> (i32, i32) {
    %c0_i32 = arith.constant 0 : i32
    %c0_i32_0 = arith.constant 0 : i32
    %c0_i32_1 = arith.constant 0 : i32
    return %c0_i32, %c0_i32_0 : i32, i32
  }
  func.func @transform_2(%arg0: i32, %arg1: i32) -> (i32, i32) {
    %c0_i32 = arith.constant 0 : i32
    %c0_i32_0 = arith.constant 0 : i32
    %c0_i32_1 = arith.constant 0 : i32
    return %c0_i32, %c0_i32_0 : i32, i32
  }
  func.func @transform_3(%arg0: i32, %arg1: i32) -> (i32, i32) {
    %c0_i32 = arith.constant 0 : i32
    %c0_i32_0 = arith.constant 0 : i32
    return %c0_i32, %arg1 : i32, i32
  }
  func.func @transform_4(%arg0: i32, %arg1: i32) -> (i32, i32) {
    %c0_i32 = arith.constant 0 : i32
    %c0_i32_0 = arith.constant 0 : i32
    return %c0_i32, %arg1 : i32, i32
  }
  func.func @transform_5(%arg0: i32, %arg1: i32) -> (i32, i32) {
    %c0_i32 = arith.constant 0 : i32
    return %arg0, %arg1 : i32, i32
  }
}

</mosaic_0001>

<llo_original>
// kernel: tpu_custom_call.1
$region0: #{tpu_custom_call.1}
  #allocation0 [shape = 'u32[]', space=smem, size = 0x4, offset = 0x4, fixed_abs, tag = 'smem constant byte address 0x4 - core index']
  #allocation1 [shape = 'u32[144,128]{1,0:T(1,128)}', space=vmem, size = 0x12000, scoped, tag = 'internal scratch']
  %s0 = inlined_call_operand.hbm [shape: f32[4,16], index: 0, kind: input, shape index: {}]
  %s1 = inlined_call_operand.hbm [shape: f32[16,16], index: 1, kind: input, shape index: {}]
  %s2 = inlined_call_operand.vmem [shape: f32[1,16], index: 2, kind: input, shape index: {}]
  %s3 = inlined_call_operand.hbm [shape: f32[16,128], index: 3, kind: input, shape index: {}]
  %s4 = inlined_call_operand.vmem [shape: f32[1,128], index: 4, kind: input, shape index: {}]
  %s5 = inlined_call_operand.hbm [shape: f32[4,128], index: 5, kind: output, shape index: {}]
  %s6 = sld [smem:[#allocation0]]
  $region42: #{tpu_custom_call.1} parent=0
    _
  %s8 = ssub.s32 1, %s6
  %s9 = scalar_select 0, %s8, %s6
  $region1: #{tpu_custom_call.1} parent=0
    #allocation2 [shape = 'u8[2048]{0}', space=vmem, size = 0x800, scoped, tag = 'input window, operand 0, single buffered']
    #allocation3 [shape = 's32[1]{0}', space=sflag, size = 0x4, scoped, tag = 'scoped memory for tpu_custom_call.1']
    #allocation4 [shape = 's32[1]{0}', space=sflag, size = 0x4, scoped, tag = 'scoped memory for tpu_custom_call.1']
    #allocation5 [shape = 'u8[8192]{0}', space=vmem, size = 0x2000, scoped, tag = 'input window, operand 1, single buffered']
    #allocation6 [shape = 's32[1]{0}', space=sflag, size = 0x4, scoped, tag = 'scoped memory for tpu_custom_call.1']
    #allocation7 [shape = 'u8[8192]{0}', space=vmem, size = 0x2000, scoped, tag = 'input window, operand 3, single buffered']
    #allocation8 [shape = 'u8[2048]{0}', space=vmem, size = 0x800, scoped, tag = 'output window, operand 0, single buffered']
    %10 = vsyncpa [#allocation3], 0
    %11 = vsyncpa [#allocation6], 0
    %12 = vsyncpa [#allocation4], 0
    // Predicated region
    $region2: #{tpu_custom_call.1} parent=1 // pred_check
      _
    $region3: #{tpu_custom_call.1} parent=1 // pred_check_branch
      %14 = sbr.rel (0) target = $region5
    $region4: #{tpu_custom_call.1} parent=1 // pred_region
      %s16 = ssub.s32 64, 64
      %17 = vsyncadd [#allocation3], %s16
      %s19 = sshll.u32 [#allocation2], 4
      %s20 = int_to_ptr.vmem [resolvable:$true] %s19
      %22 = dma.hbm_to_vmem [thread:$0]  %s0, 64, %s20, [#allocation3]
    $region5: #{tpu_custom_call.1} parent=1 // pred_fallthru
      _
    // Predicated region
    $region6: #{tpu_custom_call.1} parent=1 // pred_check
      _
    $region7: #{tpu_custom_call.1} parent=1 // pred_check_branch
      %24 = sbr.rel (0) target = $region9
    $region8: #{tpu_custom_call.1} parent=1 // pred_region
      %s26 = ssub.s32 256, 256
      %27 = vsyncadd [#allocation6], %s26
      %s28 = sshll.u32 [#allocation5], 4
      %s29 = int_to_ptr.vmem [resolvable:$true] %s28
      %34 = dma.hbm_to_vmem [thread:$0]  %s1, 256, %s29, [#allocation6], 128, 128, 8
    $region9: #{tpu_custom_call.1} parent=1 // pred_fallthru
      _
    // Predicated region
    $region10: #{tpu_custom_call.1} parent=1 // pred_check
      _
    $region11: #{tpu_custom_call.1} parent=1 // pred_check_branch
      %36 = sbr.rel (0) target = $region13
    $region12: #{tpu_custom_call.1} parent=1 // pred_region
      _
    $region13: #{tpu_custom_call.1} parent=1 // pred_fallthru
      _
    // Predicated region
    $region14: #{tpu_custom_call.1} parent=1 // pred_check
      _
    $region15: #{tpu_custom_call.1} parent=1 // pred_check_branch
      %38 = sbr.rel (0) target = $region17
    $region16: #{tpu_custom_call.1} parent=1 // pred_region
      %s40 = ssub.s32 256, 256
      %41 = vsyncadd [#allocation6], %s40
      %s42 = sshll.u32 [#allocation7], 4
      %s43 = int_to_ptr.vmem [resolvable:$true] %s42
      %48 = dma.hbm_to_vmem [thread:$0]  %s3, 256, %s43, [#allocation6], 128, 128, 8
    $region17: #{tpu_custom_call.1} parent=1 // pred_fallthru
      _
    // Predicated region
    $region18: #{tpu_custom_call.1} parent=1 // pred_check
      _
    $region19: #{tpu_custom_call.1} parent=1 // pred_check_branch
      %50 = sbr.rel (0) target = $region21
    $region20: #{tpu_custom_call.1} parent=1 // pred_region
      _
    $region21: #{tpu_custom_call.1} parent=1 // pred_fallthru
      _
    // Predicated region
    $region22: #{tpu_custom_call.1} parent=1 // pred_check
      _
    $region23: #{tpu_custom_call.1} parent=1 // pred_check_branch
      %52 = sbr.rel (0) target = $region25
    $region24: #{tpu_custom_call.1} parent=1 // pred_region
      %53 = dma.done [#allocation3], 64
    $region25: #{tpu_custom_call.1} parent=1 // pred_fallthru
      _
    // Predicated region
    $region26: #{tpu_custom_call.1} parent=1 // pred_check
      _
    $region27: #{tpu_custom_call.1} parent=1 // pred_check_branch
      %55 = sbr.rel (0) target = $region29
    $region28: #{tpu_custom_call.1} parent=1 // pred_region
      %56 = dma.done [#allocation6], 256
    $region29: #{tpu_custom_call.1} parent=1 // pred_fallthru
      _
    // Predicated region
    $region30: #{tpu_custom_call.1} parent=1 // pred_check
      _
    $region31: #{tpu_custom_call.1} parent=1 // pred_check_branch
      %58 = sbr.rel (0) target = $region33
    $region32: #{tpu_custom_call.1} parent=1 // pred_region
      %59 = dma.done [#allocation6], 256
    $region33: #{tpu_custom_call.1} parent=1 // pred_fallthru
      _
    %v60 = vld [vmem:[#allocation2] sm:$0xf]
    %v61 = vld [vmem:[#allocation5] sm:$0xff]
    %v62 = vld [vmem:[#allocation5 + $0x8] sm:$0xff]
    %v63 = vld [vmem:[%s2] sm:$0x1]
    %v65 = vlaneseq
    %v66 = vshrl.u32 %v65, 7
    %v67 = vsub.s32 0, %v66
    %v68 = vrot.slane %v63, %v67
    %vm70 = vcmask 130048
    %v72 = vsel %vm70, %v60, 0
    %74 = vmatprep.subr.mxu0 0.0
    %75 = vmatpush1.msra.mxu0 %v61
    %76 = vmatprep.subr.mxu0 0.0
    %77 = vmatpush1.msra.mxu0 %v62
    %78 = vmatprep.subr.mxu0 0.0
    %79 = vmatpush1.msra.mxu0 0.0
    %80 = vmatprep.subr.mxu0 0.0
    %81 = vmatpush1.msra.mxu0 0.0
    %82 = vmatprep.subr.mxu0 0.0
    %83 = vmatpush1.msra.mxu0 0.0
    %84 = vmatprep.subr.mxu0 0.0
    %85 = vmatpush1.msra.mxu0 0.0
    %86 = vmatprep.subr.mxu0 0.0
    %87 = vmatpush1.msra.mxu0 0.0
    %88 = vmatprep.subr.mxu0 0.0
    %89 = vmatpush1.msra.mxu0 0.0
    %90 = vmatprep.subr.mxu0 0.0
    %91 = vmatpush1.msra.mxu0 0.0
    %92 = vmatprep.subr.mxu0 0.0
    %93 = vmatpush1.msra.mxu0 0.0
    %94 = vmatprep.subr.mxu0 0.0
    %95 = vmatpush1.msra.mxu0 0.0
    %96 = vmatprep.subr.mxu0 0.0
    %97 = vmatpush1.msra.mxu0 0.0
    %98 = vmatprep.subr.mxu0 0.0
    %99 = vmatpush1.msra.mxu0 0.0
    %100 = vmatprep.subr.mxu0 0.0
    %101 = vmatpush1.msra.mxu0 0.0
    %102 = vmatprep.subr.mxu0 0.0
    %103 = vmatpush1.msra.mxu0 0.0
    %104 = vmatprep.subr.mxu0 0.0
    %105 = vmatpush1.msra.mxu0 0.0
    %106 = vmatprep.subr.mxu0 0.0
    %107 = vmatpush1.msra.mxu0 0.0
    %108 = vmatprep.subr.mxu0 0.0
    %109 = vmatpush1.msra.mxu0 0.0
    %110 = vmatprep.subr.mxu0 0.0
    %111 = vmatpush1.msra.mxu0 0.0
    %112 = vmatprep.subr.mxu0 0.0
    %113 = vmatpush1.msra.mxu0 0.0
    %114 = vmatprep.subr.mxu0 0.0
    %115 = vmatpush1.msra.mxu0 0.0
    %116 = vmatprep.subr.mxu0 0.0
    %117 = vmatpush1.msra.mxu0 0.0
    %118 = vmatprep.subr.mxu0 0.0
    %119 = vmatpush1.msra.mxu0 0.0
    %120 = vmatprep.subr.mxu0 0.0
    %121 = vmatpush1.msra.mxu0 0.0
    %122 = vmatprep.subr.mxu0 0.0
    %123 = vmatpush1.msra.mxu0 0.0
    %124 = vmatprep.subr.mxu0 0.0
    %125 = vmatpush1.msra.mxu0 0.0
    %126 = vmatprep.subr.mxu0 0.0
    %127 = vmatpush1.msra.mxu0 0.0
    %128 = vmatprep.subr.mxu0 0.0
    %129 = vmatpush1.msra.mxu0 0.0
    %130 = vmatprep.subr.mxu0 0.0
    %131 = vmatpush1.msra.mxu0 0.0
    %132 = vmatprep.subr.mxu0 0.0
    %133 = vmatpush1.msra.mxu0 0.0
    %134 = vmatprep.subr.mxu0 0.0
    %135 = vmatpush1.msra.mxu0 0.0
    %136 = vmatprep.subr.mxu0 0.0
    %137 = vmatpush1.msra.mxu0 0.0
    %138 = vmatprep.mubr.f32.mxu0 0.0
    %139 = vmatmul.mubr.f32.gmra.mrb[0].mxu0 %v72
    %v140 = vpop.f32.mrb[0].mxu0
    %v141 = vadd.f32 %v68, %v140
    %v142 = vpop.f32.mrb[0].mxu0
    %143 = vdwg.mxu0
    %vm144 = vcmp.gt.f32.partialorder %v141, 0.0
    %v145 = vmul.f32 %v141, 0.01
    %v146 = vsel %vm144, %v141, %v145
    %v147 = vld [vmem:[#allocation7] sm:$0xff]
    %v148 = vld [vmem:[#allocation7 + $0x8] sm:$0xff]
    %v149 = vld [vmem:[%s4] sm:$0x1]
    %v151 = vlaneseq
    %v152 = vshrl.u32 %v151, 7
    %v153 = vsub.s32 0, %v152
    %v154 = vrot.slane %v149, %v153
    %v157 = vsel %vm70, %v146, 0
    %159 = vmatprep.subr.mxu0 0.0
    %160 = vmatpush1.msra.mxu0 %v147
    %161 = vmatprep.subr.mxu0 0.0
    %162 = vmatpush1.msra.mxu0 %v148
    %163 = vmatprep.subr.mxu0 0.0
    %164 = vmatpush1.msra.mxu0 0.0
    %165 = vmatprep.subr.mxu0 0.0
    %166 = vmatpush1.msra.mxu0 0.0
    %167 = vmatprep.subr.mxu0 0.0
    %168 = vmatpush1.msra.mxu0 0.0
    %169 = vmatprep.subr.mxu0 0.0
    %170 = vmatpush1.msra.mxu0 0.0
    %171 = vmatprep.subr.mxu0 0.0
    %172 = vmatpush1.msra.mxu0 0.0
    %173 = vmatprep.subr.mxu0 0.0
    %174 = vmatpush1.msra.mxu0 0.0
    %175 = vmatprep.subr.mxu0 0.0
    %176 = vmatpush1.msra.mxu0 0.0
    %177 = vmatprep.subr.mxu0 0.0
    %178 = vmatpush1.msra.mxu0 0.0
    %179 = vmatprep.subr.mxu0 0.0
    %180 = vmatpush1.msra.mxu0 0.0
    %181 = vmatprep.subr.mxu0 0.0
    %182 = vmatpush1.msra.mxu0 0.0
    %183 = vmatprep.subr.mxu0 0.0
    %184 = vmatpush1.msra.mxu0 0.0
    %185 = vmatprep.subr.mxu0 0.0
    %186 = vmatpush1.msra.mxu0 0.0
    %187 = vmatprep.subr.mxu0 0.0
    %188 = vmatpush1.msra.mxu0 0.0
    %189 = vmatprep.subr.mxu0 0.0
    %190 = vmatpush1.msra.mxu0 0.0
    %191 = vmatprep.subr.mxu0 0.0
    %192 = vmatpush1.msra.mxu0 0.0
    %193 = vmatprep.subr.mxu0 0.0
    %194 = vmatpush1.msra.mxu0 0.0
    %195 = vmatprep.subr.mxu0 0.0
    %196 = vmatpush1.msra.mxu0 0.0
    %197 = vmatprep.subr.mxu0 0.0
    %198 = vmatpush1.msra.mxu0 0.0
    %199 = vmatprep.subr.mxu0 0.0
    %200 = vmatpush1.msra.mxu0 0.0
    %201 = vmatprep.subr.mxu0 0.0
    %202 = vmatpush1.msra.mxu0 0.0
    %203 = vmatprep.subr.mxu0 0.0
    %204 = vmatpush1.msra.mxu0 0.0
    %205 = vmatprep.subr.mxu0 0.0
    %206 = vmatpush1.msra.mxu0 0.0
    %207 = vmatprep.subr.mxu0 0.0
    %208 = vmatpush1.msra.mxu0 0.0
    %209 = vmatprep.subr.mxu0 0.0
    %210 = vmatpush1.msra.mxu0 0.0
    %211 = vmatprep.subr.mxu0 0.0
    %212 = vmatpush1.msra.mxu0 0.0
    %213 = vmatprep.subr.mxu0 0.0
    %214 = vmatpush1.msra.mxu0 0.0
    %215 = vmatprep.subr.mxu0 0.0
    %216 = vmatpush1.msra.mxu0 0.0
    %217 = vmatprep.subr.mxu0 0.0
    %218 = vmatpush1.msra.mxu0 0.0
    %219 = vmatprep.subr.mxu0 0.0
    %220 = vmatpush1.msra.mxu0 0.0
    %221 = vmatprep.subr.mxu0 0.0
    %222 = vmatpush1.msra.mxu0 0.0
    %223 = vmatprep.mubr.f32.mxu0 0.0
    %224 = vmatmul.mubr.f32.gmra.mrb[0].mxu0 %v157
    %v225 = vpop.f32.mrb[0].mxu0
    %v226 = vadd.f32 %v154, %v225
    %v227 = vpop.f32.mrb[0].mxu0
    %228 = vdwg.mxu0
    %v229 = vtanh.pop %v226
    %230 = vst [vmem:[#allocation8] sm:$0xf] %v229
    // Predicated region
    $region34: #{tpu_custom_call.1} parent=1 // pred_check
      _
    $region35: #{tpu_custom_call.1} parent=1 // pred_check_branch
      %232 = sbr.rel (0) target = $region37
    $region36: #{tpu_custom_call.1} parent=1 // pred_region
      %s234 = ssub.s32 64, 64
      %235 = vsyncadd [#allocation4], %s234
      %s237 = sshll.u32 [#allocation8], 4
      %s238 = int_to_ptr.vmem [resolvable:$true] %s237
      %240 = dma.vmem_to_hbm [thread:$0]  %s238, 64, %s5, [#allocation4]
    $region37: #{tpu_custom_call.1} parent=1 // pred_fallthru
      _
    // Predicated region
    $region38: #{tpu_custom_call.1} parent=1 // pred_check
      _
    $region39: #{tpu_custom_call.1} parent=1 // pred_check_branch
      %242 = sbr.rel (0) target = $region41
    $region40: #{tpu_custom_call.1} parent=1 // pred_region
      %243 = dma.done [#allocation4], 64
    $region41: #{tpu_custom_call.1} parent=1 // pred_fallthru
      _
    %244 = vsyncpa [#allocation3], 1
    %245 = vsyncpa [#allocation6], 1
    %246 = vsyncpa [#allocation4], 1

// kernel: tpu_custom_call.1
$region0: #{tpu_custom_call.1}
  #allocation0 [shape = 'u32[]', space=smem, size = 0x4, offset = 0x4, fixed_abs, tag = 'smem constant byte address 0x4 - core index']
  #allocation1 [shape = 'u32[144,128]{1,0:T(1,128)}', space=vmem, size = 0x12000, scoped, tag = 'internal scratch']
  %s0 = inlined_call_operand.hbm [shape: f32[4,16], index: 0, kind: input, shape index: {}]
  %s1 = inlined_call_operand.hbm [shape: f32[16,16], index: 1, kind: input, shape index: {}]
  %s2 = inlined_call_operand.vmem [shape: f32[1,16], index: 2, kind: input, shape index: {}]
  %s3 = inlined_call_operand.hbm [shape: f32[16,128], index: 3, kind: input, shape index: {}]
  %s4 = inlined_call_operand.vmem [shape: f32[1,128], index: 4, kind: input, shape index: {}]
  %s5 = inlined_call_operand.hbm [shape: f32[4,128], index: 5, kind: output, shape index: {}]
  %s6 = sld [smem:[#allocation0]]
  $region42: #{tpu_custom_call.1} parent=0
    _
  %s8 = ssub.s32 1, %s6
  %s9 = scalar_select 0, %s8, %s6
  $region1: #{tpu_custom_call.1} parent=0
    #allocation2 [shape = 'u8[2048]{0}', space=vmem, size = 0x800, scoped, tag = 'input window, operand 0, single buffered']
    #allocation3 [shape = 's32[1]{0}', space=sflag, size = 0x4, scoped, tag = 'scoped memory for tpu_custom_call.1']
    #allocation4 [shape = 's32[1]{0}', space=sflag, size = 0x4, scoped, tag = 'scoped memory for tpu_custom_call.1']
    #allocation5 [shape = 'u8[8192]{0}', space=vmem, size = 0x2000, scoped, tag = 'input window, operand 1, single buffered']
    #allocation6 [shape = 's32[1]{0}', space=sflag, size = 0x4, scoped, tag = 'scoped memory for tpu_custom_call.1']
    #allocation7 [shape = 'u8[8192]{0}', space=vmem, size = 0x2000, scoped, tag = 'input window, operand 3, single buffered']
    #allocation8 [shape = 'u8[2048]{0}', space=vmem, size = 0x800, scoped, tag = 'output window, operand 0, single buffered']
    %10 = vsyncpa [#allocation3], 0
    %11 = vsyncpa [#allocation6], 0
    %12 = vsyncpa [#allocation4], 0
    // Predicated region
    $region2: #{tpu_custom_call.1} parent=1 // pred_check
      _
    $region3: #{tpu_custom_call.1} parent=1 // pred_check_branch
      %14 = sbr.rel (0) target = $region5
    $region4: #{tpu_custom_call.1} parent=1 // pred_region
      %s16 = ssub.s32 64, 64
      %17 = vsyncadd [#allocation3], %s16
      %s19 = sshll.u32 [#allocation2], 4
      %s20 = int_to_ptr.vmem [resolvable:$true] %s19
      %22 = dma.hbm_to_vmem [thread:$0]  %s0, 64, %s20, [#allocation3]
    $region5: #{tpu_custom_call.1} parent=1 // pred_fallthru
      _
    // Predicated region
    $region6: #{tpu_custom_call.1} parent=1 // pred_check
      _
    $region7: #{tpu_custom_call.1} parent=1 // pred_check_branch
      %24 = sbr.rel (0) target = $region9
    $region8: #{tpu_custom_call.1} parent=1 // pred_region
      %s26 = ssub.s32 256, 256
      %27 = vsyncadd [#allocation6], %s26
      %s28 = sshll.u32 [#allocation5], 4
      %s29 = int_to_ptr.vmem [resolvable:$true] %s28
      %34 = dma.hbm_to_vmem [thread:$0]  %s1, 256, %s29, [#allocation6], 128, 128, 8
    $region9: #{tpu_custom_call.1} parent=1 // pred_fallthru
      _
    // Predicated region
    $region10: #{tpu_custom_call.1} parent=1 // pred_check
      _
    $region11: #{tpu_custom_call.1} parent=1 // pred_check_branch
      %36 = sbr.rel (0) target = $region13
    $region12: #{tpu_custom_call.1} parent=1 // pred_region
      _
    $region13: #{tpu_custom_call.1} parent=1 // pred_fallthru
      _
    // Predicated region
    $region14: #{tpu_custom_call.1} parent=1 // pred_check
      _
    $region15: #{tpu_custom_call.1} parent=1 // pred_check_branch
      %38 = sbr.rel (0) target = $region17
    $region16: #{tpu_custom_call.1} parent=1 // pred_region
      %s40 = ssub.s32 256, 256
      %41 = vsyncadd [#allocation6], %s40
      %s42 = sshll.u32 [#allocation7], 4
      %s43 = int_to_ptr.vmem [resolvable:$true] %s42
      %48 = dma.hbm_to_vmem [thread:$0]  %s3, 256, %s43, [#allocation6], 128, 128, 8
    $region17: #{tpu_custom_call.1} parent=1 // pred_fallthru
      _
    // Predicated region
    $region18: #{tpu_custom_call.1} parent=1 // pred_check
      _
    $region19: #{tpu_custom_call.1} parent=1 // pred_check_branch
      %50 = sbr.rel (0) target = $region21
    $region20: #{tpu_custom_call.1} parent=1 // pred_region
      _
    $region21: #{tpu_custom_call.1} parent=1 // pred_fallthru
      _
    // Predicated region
    $region22: #{tpu_custom_call.1} parent=1 // pred_check
      _
    $region23: #{tpu_custom_call.1} parent=1 // pred_check_branch
      %52 = sbr.rel (0) target = $region25
    $region24: #{tpu_custom_call.1} parent=1 // pred_region
      %53 = dma.done [#allocation3], 64
    $region25: #{tpu_custom_call.1} parent=1 // pred_fallthru
      _
    // Predicated region
    $region26: #{tpu_custom_call.1} parent=1 // pred_check
      _
    $region27: #{tpu_custom_call.1} parent=1 // pred_check_branch
      %55 = sbr.rel (0) target = $region29
    $region28: #{tpu_custom_call.1} parent=1 // pred_region
      %56 = dma.done [#allocation6], 256
    $region29: #{tpu_custom_call.1} parent=1 // pred_fallthru
      _
    // Predicated region
    $region30: #{tpu_custom_call.1} parent=1 // pred_check
      _
    $region31: #{tpu_custom_call.1} parent=1 // pred_check_branch
      %58 = sbr.rel (0) target = $region33
    $region32: #{tpu_custom_call.1} parent=1 // pred_region
      %59 = dma.done [#allocation6], 256
    $region33: #{tpu_custom_call.1} parent=1 // pred_fallthru
      _
    %v60 = vld [vmem:[#allocation2] sm:$0xf]
    %v61 = vld [vmem:[#allocation5] sm:$0xff]
    %v62 = vld [vmem:[#allocation5 + $0x8] sm:$0xff]
    %v63 = vld [vmem:[%s2] sm:$0x1]
    %v65 = vlaneseq
    %v66 = vshrl.u32 %v65, 7
    %v67 = vsub.s32 0, %v66
    %v68 = vrot.slane %v63, %v67
    %vm70 = vcmask 130048
    %v72 = vsel %vm70, %v60, 0
    %74 = vmatprep.subr.mxu0 0.0
    %75 = vmatpush1.msra.mxu0 %v61
    %76 = vmatprep.subr.mxu0 0.0
    %77 = vmatpush1.msra.mxu0 %v62
    %78 = vmatprep.subr.mxu0 0.0
    %79 = vmatpush1.msra.mxu0 0.0
    %80 = vmatprep.subr.mxu0 0.0
    %81 = vmatpush1.msra.mxu0 0.0
    %82 = vmatprep.subr.mxu0 0.0
    %83 = vmatpush1.msra.mxu0 0.0
    %84 = vmatprep.subr.mxu0 0.0
    %85 = vmatpush1.msra.mxu0 0.0
    %86 = vmatprep.subr.mxu0 0.0
    %87 = vmatpush1.msra.mxu0 0.0
    %88 = vmatprep.subr.mxu0 0.0
    %89 = vmatpush1.msra.mxu0 0.0
    %90 = vmatprep.subr.mxu0 0.0
    %91 = vmatpush1.msra.mxu0 0.0
    %92 = vmatprep.subr.mxu0 0.0
    %93 = vmatpush1.msra.mxu0 0.0
    %94 = vmatprep.subr.mxu0 0.0
    %95 = vmatpush1.msra.mxu0 0.0
    %96 = vmatprep.subr.mxu0 0.0
    %97 = vmatpush1.msra.mxu0 0.0
    %98 = vmatprep.subr.mxu0 0.0
    %99 = vmatpush1.msra.mxu0 0.0
    %100 = vmatprep.subr.mxu0 0.0
    %101 = vmatpush1.msra.mxu0 0.0
    %102 = vmatprep.subr.mxu0 0.0
    %103 = vmatpush1.msra.mxu0 0.0
    %104 = vmatprep.subr.mxu0 0.0
    %105 = vmatpush1.msra.mxu0 0.0
    %106 = vmatprep.subr.mxu0 0.0
    %107 = vmatpush1.msra.mxu0 0.0
    %108 = vmatprep.subr.mxu0 0.0
    %109 = vmatpush1.msra.mxu0 0.0
    %110 = vmatprep.subr.mxu0 0.0
    %111 = vmatpush1.msra.mxu0 0.0
    %112 = vmatprep.subr.mxu0 0.0
    %113 = vmatpush1.msra.mxu0 0.0
    %114 = vmatprep.subr.mxu0 0.0
    %115 = vmatpush1.msra.mxu0 0.0
    %116 = vmatprep.subr.mxu0 0.0
    %117 = vmatpush1.msra.mxu0 0.0
    %118 = vmatprep.subr.mxu0 0.0
    %119 = vmatpush1.msra.mxu0 0.0
    %120 = vmatprep.subr.mxu0 0.0
    %121 = vmatpush1.msra.mxu0 0.0
    %122 = vmatprep.subr.mxu0 0.0
    %123 = vmatpush1.msra.mxu0 0.0
    %124 = vmatprep.subr.mxu0 0.0
    %125 = vmatpush1.msra.mxu0 0.0
    %126 = vmatprep.subr.mxu0 0.0
    %127 = vmatpush1.msra.mxu0 0.0
    %128 = vmatprep.subr.mxu0 0.0
    %129 = vmatpush1.msra.mxu0 0.0
    %130 = vmatprep.subr.mxu0 0.0
    %131 = vmatpush1.msra.mxu0 0.0
    %132 = vmatprep.subr.mxu0 0.0
    %133 = vmatpush1.msra.mxu0 0.0
    %134 = vmatprep.subr.mxu0 0.0
    %135 = vmatpush1.msra.mxu0 0.0
    %136 = vmatprep.subr.mxu0 0.0
    %137 = vmatpush1.msra.mxu0 0.0
    %138 = vmatprep.mubr.f32.mxu0 0.0
    %139 = vmatmul.mubr.f32.gmra.mrb[0].mxu0 %v72
    %v140 = vpop.f32.mrb[0].mxu0
    %v141 = vadd.f32 %v68, %v140
    %v142 = vpop.f32.mrb[0].mxu0
    %143 = vdwg.mxu0
    %vm144 = vcmp.gt.f32.partialorder %v141, 0.0
    %v145 = vmul.f32 %v141, 0.01
    %v146 = vsel %vm144, %v141, %v145
    %v147 = vld [vmem:[#allocation7] sm:$0xff]
    %v148 = vld [vmem:[#allocation7 + $0x8] sm:$0xff]
    %v149 = vld [vmem:[%s4] sm:$0x1]
    %v151 = vlaneseq
    %v152 = vshrl.u32 %v151, 7
    %v153 = vsub.s32 0, %v152
    %v154 = vrot.slane %v149, %v153
    %v157 = vsel %vm70, %v146, 0
    %159 = vmatprep.subr.mxu0 0.0
    %160 = vmatpush1.msra.mxu0 %v147
    %161 = vmatprep.subr.mxu0 0.0
    %162 = vmatpush1.msra.mxu0 %v148
    %163 = vmatprep.subr.mxu0 0.0
    %164 = vmatpush1.msra.mxu0 0.0
    %165 = vmatprep.subr.mxu0 0.0
    %166 = vmatpush1.msra.mxu0 0.0
    %167 = vmatprep.subr.mxu0 0.0
    %168 = vmatpush1.msra.mxu0 0.0
    %169 = vmatprep.subr.mxu0 0.0
    %170 = vmatpush1.msra.mxu0 0.0
    %171 = vmatprep.subr.mxu0 0.0
    %172 = vmatpush1.msra.mxu0 0.0
    %173 = vmatprep.subr.mxu0 0.0
    %174 = vmatpush1.msra.mxu0 0.0
    %175 = vmatprep.subr.mxu0 0.0
    %176 = vmatpush1.msra.mxu0 0.0
    %177 = vmatprep.subr.mxu0 0.0
    %178 = vmatpush1.msra.mxu0 0.0
    %179 = vmatprep.subr.mxu0 0.0
    %180 = vmatpush1.msra.mxu0 0.0
    %181 = vmatprep.subr.mxu0 0.0
    %182 = vmatpush1.msra.mxu0 0.0
    %183 = vmatprep.subr.mxu0 0.0
    %184 = vmatpush1.msra.mxu0 0.0
    %185 = vmatprep.subr.mxu0 0.0
    %186 = vmatpush1.msra.mxu0 0.0
    %187 = vmatprep.subr.mxu0 0.0
    %188 = vmatpush1.msra.mxu0 0.0
    %189 = vmatprep.subr.mxu0 0.0
    %190 = vmatpush1.msra.mxu0 0.0
    %191 = vmatprep.subr.mxu0 0.0
    %192 = vmatpush1.msra.mxu0 0.0
    %193 = vmatprep.subr.mxu0 0.0
    %194 = vmatpush1.msra.mxu0 0.0
    %195 = vmatprep.subr.mxu0 0.0
    %196 = vmatpush1.msra.mxu0 0.0
    %197 = vmatprep.subr.mxu0 0.0
    %198 = vmatpush1.msra.mxu0 0.0
    %199 = vmatprep.subr.mxu0 0.0
    %200 = vmatpush1.msra.mxu0 0.0
    %201 = vmatprep.subr.mxu0 0.0
    %202 = vmatpush1.msra.mxu0 0.0
    %203 = vmatprep.subr.mxu0 0.0
    %204 = vmatpush1.msra.mxu0 0.0
    %205 = vmatprep.subr.mxu0 0.0
    %206 = vmatpush1.msra.mxu0 0.0
    %207 = vmatprep.subr.mxu0 0.0
    %208 = vmatpush1.msra.mxu0 0.0
    %209 = vmatprep.subr.mxu0 0.0
    %210 = vmatpush1.msra.mxu0 0.0
    %211 = vmatprep.subr.mxu0 0.0
    %212 = vmatpush1.msra.mxu0 0.0
    %213 = vmatprep.subr.mxu0 0.0
    %214 = vmatpush1.msra.mxu0 0.0
    %215 = vmatprep.subr.mxu0 0.0
    %216 = vmatpush1.msra.mxu0 0.0
    %217 = vmatprep.subr.mxu0 0.0
    %218 = vmatpush1.msra.mxu0 0.0
    %219 = vmatprep.subr.mxu0 0.0
    %220 = vmatpush1.msra.mxu0 0.0
    %221 = vmatprep.subr.mxu0 0.0
    %222 = vmatpush1.msra.mxu0 0.0
    %223 = vmatprep.mubr.f32.mxu0 0.0
    %224 = vmatmul.mubr.f32.gmra.mrb[0].mxu0 %v157
    %v225 = vpop.f32.mrb[0].mxu0
    %v226 = vadd.f32 %v154, %v225
    %v227 = vpop.f32.mrb[0].mxu0
    %228 = vdwg.mxu0
    %v229 = vtanh.pop %v226
    %230 = vst [vmem:[#allocation8] sm:$0xf] %v229
    // Predicated region
    $region34: #{tpu_custom_call.1} parent=1 // pred_check
      _
    $region35: #{tpu_custom_call.1} parent=1 // pred_check_branch
      %232 = sbr.rel (0) target = $region37
    $region36: #{tpu_custom_call.1} parent=1 // pred_region
      %s234 = ssub.s32 64, 64
      %235 = vsyncadd [#allocation4], %s234
      %s237 = sshll.u32 [#allocation8], 4
      %s238 = int_to_ptr.vmem [resolvable:$true] %s237
      %240 = dma.vmem_to_hbm [thread:$0]  %s238, 64, %s5, [#allocation4]
    $region37: #{tpu_custom_call.1} parent=1 // pred_fallthru
      _
    // Predicated region
    $region38: #{tpu_custom_call.1} parent=1 // pred_check
      _
    $region39: #{tpu_custom_call.1} parent=1 // pred_check_branch
      %242 = sbr.rel (0) target = $region41
    $region40: #{tpu_custom_call.1} parent=1 // pred_region
      %243 = dma.done [#allocation4], 64
    $region41: #{tpu_custom_call.1} parent=1 // pred_fallthru
      _
    %244 = vsyncpa [#allocation3], 1
    %245 = vsyncpa [#allocation6], 1
    %246 = vsyncpa [#allocation4], 1

</llo_original>
